<compile_context>
chip_gen: v7x
topology: tpu7x:2x2x1
jax: 0.10.0
libtpu: 0.0.40
codegen_flags: <defaults>
</compile_context>

<pallas_src>
import jax
import jax.numpy as jnp
from jax.experimental import pallas as pl
from jax.experimental.pallas import tpu as pltpu

_HALO = 8              # row-halo height (multiple of 8) -> supports KH <= 9
_TILE_OH = 256         # default output-row tile height for the tiled path
_WHOLE_IMG_MAX = 32 * 1024   # <= this many pixels per image: whole-image path


def _round_up(a, b):
    return (a + b - 1) // b * b


# ---------------------------------------------------------------------------
# Whole-image path (small images): grid over batch tiles only, un-padded
# blocks, no wrapper pad / slice, per-step overhead amortised over B_tile.
# ---------------------------------------------------------------------------
def _corr2d_whole_kernel(w_ref, b_ref, x_ref, o_ref):
    """w/b in SMEM; x_ref (B_tile, H, W); o_ref (B_tile, OH, OW)."""
    kh, kw = w_ref.shape
    bt, oh, ow = o_ref.shape
    x = x_ref[...]
    acc = jnp.full((bt, oh, ow), b_ref[0], jnp.float32)   # bias-init acc
    for di in range(kh):
        for dj in range(kw):
            acc = acc + x[:, di:di + oh, dj:dj + ow] * w_ref[di, dj]
    o_ref[...] = acc


def _conv2d_whole(xb, weight, bias):
    B, H, W = xb.shape
    KH, KW = weight.shape
    OH, OW = H - KH + 1, W - KW + 1

    # Batch tile: amortise per-step overhead over many small images, keep
    # >= 2 grid steps whenever B >= 2 (v7x: 2 TensorCores), bound VMEM use.
    B_tile = min(32, max(1, pl.cdiv(B, 2)))
    B_tile = min(B_tile, max(1, (2 * 2**20) // (4 * H * W)))
    n_bt = pl.cdiv(B, B_tile)
    B_pad = n_bt * B_tile

    xp = xb.astype(jnp.float32)
    if B_pad != B:
        xp = jnp.pad(xp, ((0, B_pad - B), (0, 0), (0, 0)))

    out = pl.pallas_call(
        _corr2d_whole_kernel,
        out_shape=jax.ShapeDtypeStruct((B_pad, OH, OW), jnp.float32),
        grid=(n_bt,),
        in_specs=[
            pl.BlockSpec(memory_space=pltpu.MemorySpace.SMEM),   # weight
            pl.BlockSpec(memory_space=pltpu.MemorySpace.SMEM),   # bias
            pl.BlockSpec((B_tile, H, W), lambda i: (i, 0, 0)),
        ],
        out_specs=pl.BlockSpec((B_tile, OH, OW), lambda i: (i, 0, 0)),
        compiler_params=pltpu.CompilerParams(
            dimension_semantics=("parallel",)),
    )(weight.astype(jnp.float32), bias.astype(jnp.float32), xp)
    return out[:B] if B_pad != B else out


# ---------------------------------------------------------------------------
# Tiled path (large images): lane-dense padded output, row tiles + 8-row halo.
# ---------------------------------------------------------------------------
def _corr2d_tiled_kh1_kernel(w_ref, b_ref, x_ref, o_ref):
    """KH == 1 variant: no row halo, no scratch."""
    kw = w_ref.shape[1]
    t, ow = o_ref.shape[1], o_ref.shape[2]
    xm = x_ref[0]                                        # (T, W_x)
    acc = jnp.full((t, ow), b_ref[0], jnp.float32)
    for dj in range(kw):
        acc = acc + xm[:, dj:dj + ow] * w_ref[0, dj]
    o_ref[0] = acc


def _corr2d_tiled_halo_kernel(w_ref, b_ref, x_ref, xh_ref, o_ref, xbot_ref):
    """KH > 1: top T-8 output rows read only the main tile; the bottom 8 rows
    read a small 16-row stitched block (no full-tile stitch copy)."""
    kh, kw = w_ref.shape
    t, ow = o_ref.shape[1], o_ref.shape[2]
    t_top = t - _HALO

    xm = x_ref[0]                                        # (T, W_x)

    # ---- top region: output rows [0, t_top), all reads stay inside xm ----
    acc = jnp.full((t_top, ow), b_ref[0], jnp.float32)
    for di in range(kh):
        row_blk = xm[di:di + t_top, :]
        for dj in range(kw):
            acc = acc + row_blk[:, dj:dj + ow] * w_ref[di, dj]
    o_ref[0, 0:t_top, :] = acc

    # ---- bottom region: stitch ONLY the last 8 main rows + 8 halo rows ----
    xbot_ref[0:_HALO, :] = xm[t_top:t, :]
    xbot_ref[_HALO:, :] = xh_ref[0]
    xbot = xbot_ref[...]                                 # (16, W_x)
    accb = jnp.full((_HALO, ow), b_ref[0], jnp.float32)
    for di in range(kh):
        row_blk = xbot[di:di + _HALO, :]
        for dj in range(kw):
            accb = accb + row_blk[:, dj:dj + ow] * w_ref[di, dj]
    o_ref[0, t_top:t, :] = accb


def _conv2d_tiled(xb, weight, bias, *, tile_oh):
    B, H, W = xb.shape
    KH, KW = weight.shape
    if KH > _HALO + 1:
        # TODO(synk): generalize the halo height for very tall kernels.
        raise NotImplementedError("row halo currently supports KH <= 9")
    OH, OW = H - KH + 1, W - KW + 1

    # Lane-dense padded output width; input width covers every column shift.
    OW_pad = _round_up(OW, 128)
    W_x = _round_up(OW_pad + KW - 1, 128)

    # Row tiling: balanced tiles (< 8 padded rows per tile), clamped to a
    # ~40 MiB per-step VMEM budget, and >= 2 grid steps for a single image.
    vmem_budget = 40 * 2**20
    t_cap = min(tile_oh, vmem_budget // (4 * (2 * W_x + 2 * OW_pad)))
    t_cap = max(2 * _HALO, (t_cap // 8) * 8)
    n_row_tiles = pl.cdiv(OH, t_cap)
    if B * n_row_tiles < 2 and OH >= 4 * _HALO:
        n_row_tiles = 2                       # give both v7x TCs work
    T = _round_up(pl.cdiv(OH, n_row_tiles), 8)
    if KH > 1:
        T = max(T, 2 * _HALO)                 # top region needs >= 8 rows
    assert T % _HALO == 0, "halo index_map requires T to be a multiple of 8"
    OH_pad = T * n_row_tiles

    # Padded input: zero rows/cols only ever feed output positions that are
    # sliced away below.
    H_x = OH_pad + (_HALO if KH > 1 else 0)
    xp = jnp.pad(xb.astype(jnp.float32), ((0, 0), (0, H_x - H), (0, W_x - W)))

    # Per-step VMEM footprint (double-buffered in/out + small stitch scratch).
    step_bytes = 4 * (2 * T * W_x + 2 * T * OW_pad)
    if KH > 1:
        step_bytes += 4 * (2 * _HALO * W_x + 2 * _HALO * W_x)
    vmem_limit = int(min(max(32 * 2**20, step_bytes + 4 * 2**20), 64 * 2**20))

    smem = pltpu.MemorySpace.SMEM
    w32 = weight.astype(jnp.float32)
    b32 = bias.astype(jnp.float32)

    if KH == 1:
        kernel = _corr2d_tiled_kh1_kernel
        in_specs = [
            pl.BlockSpec(memory_space=smem),                       # weight
            pl.BlockSpec(memory_space=smem),                       # bias
            pl.BlockSpec((1, T, W_x), lambda b, i: (b, i, 0)),     # main tile
        ]
        scratch_shapes = []
        operands = (w32, b32, xp)
        fuse = [False, False, True]
    else:
        kernel = _corr2d_tiled_halo_kernel
        in_specs = [
            pl.BlockSpec(memory_space=smem),                       # weight
            pl.BlockSpec(memory_space=smem),                       # bias
            pl.BlockSpec((1, T, W_x), lambda b, i: (b, i, 0)),     # main tile
            # 8-row halo immediately below the main tile (T % 8 == 0).
            pl.BlockSpec((1, _HALO, W_x),
                         lambda b, i: (b, (i + 1) * T // _HALO, 0)),
        ]
        scratch_shapes = [pltpu.VMEM((2 * _HALO, W_x), jnp.float32)]
        operands = (w32, b32, xp, xp)
        fuse = [False, False, True, True]

    out = pl.pallas_call(
        kernel,
        out_shape=jax.ShapeDtypeStruct((B, OH_pad, OW_pad), jnp.float32),
        grid=(B, n_row_tiles),
        in_specs=in_specs,
        out_specs=pl.BlockSpec((1, T, OW_pad), lambda b, i: (b, i, 0)),
        scratch_shapes=scratch_shapes,
        compiler_params=pltpu.CompilerParams(
            dimension_semantics=("parallel", "parallel"),
            vmem_limit_bytes=vmem_limit,
            allow_input_fusion=fuse),
    )(*operands)

    # TODO(synk): hand the padded (OH_pad, OW_pad) slab to the consumer (or
    #             mask the ragged tail in-kernel) to drop this extra pass.
    return out[:, :OH, :OW]


# ---------------------------------------------------------------------------
# Public entry points (match Conv2D.forward semantics).
# ---------------------------------------------------------------------------
def conv2d_forward_batched(xb, weight, bias, *, tile_oh=_TILE_OH,
                           force_tiled=False):
    """corr2d(x, weight) + bias over a batch of 2-D images (B, H, W)."""
    B, H, W = xb.shape
    KH, KW = weight.shape
    if KH > H or KW > W:
        raise ValueError("kernel larger than input")
    if not force_tiled and H * W <= _WHOLE_IMG_MAX:
        return _conv2d_whole(xb, weight, bias)
    return _conv2d_tiled(xb, weight, bias, tile_oh=tile_oh)


def conv2d_forward(x, weight, bias, *, tile_oh=_TILE_OH, force_tiled=False):
    """Equivalent of Conv2D.forward on a single 2-D image."""
    return conv2d_forward_batched(x[None], weight, bias, tile_oh=tile_oh,
                                  force_tiled=force_tiled)[0]


def _corr2d_ref(x, k):
    """Pure-JAX reference mirroring the PyTorch corr2d loop."""
    kh, kw = k.shape
    oh, ow = x.shape[0] - kh + 1, x.shape[1] - kw + 1
    y = jnp.zeros((oh, ow), jnp.float32)
    for di in range(kh):
        for dj in range(kw):
            y = y + x[di:di + oh, dj:dj + ow] * k[di, dj]
    return y


if __name__ == "__main__":
    key = jax.random.PRNGKey(0)
    kx, kw_, kb, kx2, kw2, kx3, kw3, kx4 = jax.random.split(key, 8)

    # 1) Module-exact case: single 16x16 image, kernel_size=(1, 2) (same
    #    shape as the k = [[1, -1]] example), randn weight/bias.
    H, W = 16, 16
    kernel_size = (1, 2)
    x = jax.random.normal(kx, (H, W), dtype=jnp.float32)
    weight = jax.random.normal(kw_, kernel_size, dtype=jnp.float32)
    bias = jax.random.normal(kb, (1,), dtype=jnp.float32)

    out = jax.block_until_ready(conv2d_forward(x, weight, bias))
    ref = _corr2d_ref(x, weight) + bias[0]
    assert out.shape == (H - kernel_size[0] + 1, W - kernel_size[1] + 1)
    assert jnp.allclose(out, ref, atol=1e-5, rtol=1e-5)

    # 2) Batched small-image path: B_tile images per grid step.
    B = 4
    xb = jax.random.normal(kx2, (B, H, W), dtype=jnp.float32)
    outb = jax.block_until_ready(conv2d_forward_batched(xb, weight, bias))
    for b in range(B):
        refb = _corr2d_ref(xb[b], weight) + bias[0]
        assert jnp.allclose(outb[b], refb, atol=1e-5, rtol=1e-5)

    # 3) Tiled path with row halo: 3x3 kernel, small row tile -> several row
    #    tiles, top/bottom split and the 8-row halo BlockSpec exercised.
    H2, W2 = 48, 40
    x2 = jax.random.normal(kx3, (H2, W2), dtype=jnp.float32)
    w2 = jax.random.normal(kw2, (3, 3), dtype=jnp.float32)
    out2 = jax.block_until_ready(
        conv2d_forward(x2, w2, bias, tile_oh=16, force_tiled=True))
    ref2 = _corr2d_ref(x2, w2) + bias[0]
    assert out2.shape == (H2 - 2, W2 - 2)
    assert jnp.allclose(out2, ref2, atol=1e-5, rtol=1e-5)

    # 4) Tiled path, KH == 1 variant (no halo input, no scratch).
    H3, W3 = 40, 40
    x3 = jax.random.normal(kx4, (H3, W3), dtype=jnp.float32)
    w3 = jax.random.normal(kw3, (1, 3), dtype=jnp.float32)
    out3 = jax.block_until_ready(
        conv2d_forward(x3, w3, bias, tile_oh=16, force_tiled=True))
    ref3 = _corr2d_ref(x3, w3) + bias[0]
    assert jnp.allclose(out3, ref3, atol=1e-5, rtol=1e-5)

    # 5) Auto-selected tiled path (image above the whole-image threshold),
    #    default tile height; single image is split into >= 2 row tiles.
    H4, W4 = 200, 300
    x4 = jax.random.normal(kx2, (H4, W4), dtype=jnp.float32)
    out4 = jax.block_until_ready(conv2d_forward(x4, w2, bias))
    ref4 = _corr2d_ref(x4, w2) + bias[0]
    assert out4.shape == (H4 - 2, W4 - 2)
    assert jnp.allclose(out4, ref4, atol=1e-5, rtol=1e-5)

    print("KERNEL_OK")
</pallas_src>

<mosaic_0001>
module attributes {stable_mosaic.version = 11 : i64} {
  func.func @_corr2d_whole_kernel(%arg0: i32, %arg1: memref<1x2xf32, #tpu.memory_space<smem>>, %arg2: memref<1xf32, #tpu.memory_space<smem>>, %arg3: memref<1x16x16xf32, #tpu.memory_space<vmem>>, %arg4: memref<1x16x15xf32, #tpu.memory_space<vmem>>) attributes {dimension_semantics = [#tpu.dimension_semantics<parallel>], iteration_bounds = array<i64: 1>, scalar_prefetch = 0 : i64, scratch_operands = 0 : i64, tpu.core_type = #tpu.core_type<tc>, window_params = [{transform_indices = @transform_0, window_bounds = array<i64: 1, 2>}, {transform_indices = @transform_1, window_bounds = array<i64: 1>}, {transform_indices = @transform_2, window_bounds = array<i64: 1, 16, 16>}, {transform_indices = @transform_3, window_bounds = array<i64: 1, 16, 15>}]} {
    %c0 = arith.constant 0 : index
    %c0_0 = arith.constant 0 : index
    %c0_1 = arith.constant 0 : index
    %0 = vector.load %arg3[%c0, %c0_0, %c0_1] : memref<1x16x16xf32, #tpu.memory_space<vmem>>, vector<1x16x16xf32>
    %c0_2 = arith.constant 0 : index
    %1 = memref.load %arg2[%c0_2] : memref<1xf32, #tpu.memory_space<smem>>
    %2 = vector.broadcast %1 : f32 to vector<1x16x15xf32>
    %3 = vector.extract_strided_slice %0 {offsets = [0, 0, 0], sizes = [1, 16, 15], strides = [1, 1, 1]} : vector<1x16x16xf32> to vector<1x16x15xf32>
    %c0_3 = arith.constant 0 : index
    %c0_4 = arith.constant 0 : index
    %4 = memref.load %arg1[%c0_3, %c0_4] : memref<1x2xf32, #tpu.memory_space<smem>>
    %5 = vector.broadcast %4 : f32 to vector<1x16x15xf32>
    %6 = arith.mulf %3, %5 : vector<1x16x15xf32>
    %7 = arith.addf %2, %6 : vector<1x16x15xf32>
    %8 = vector.extract_strided_slice %0 {offsets = [0, 0, 1], sizes = [1, 16, 15], strides = [1, 1, 1]} : vector<1x16x16xf32> to vector<1x16x15xf32>
    %c0_5 = arith.constant 0 : index
    %c1 = arith.constant 1 : index
    %9 = memref.load %arg1[%c0_5, %c1] : memref<1x2xf32, #tpu.memory_space<smem>>
    %10 = vector.broadcast %9 : f32 to vector<1x16x15xf32>
    %11 = arith.mulf %8, %10 : vector<1x16x15xf32>
    %12 = arith.addf %7, %11 : vector<1x16x15xf32>
    %c0_6 = arith.constant 0 : index
    %c0_7 = arith.constant 0 : index
    %c0_8 = arith.constant 0 : index
    %13 = vector.load %arg4[%c0_6, %c0_7, %c0_8] : memref<1x16x15xf32, #tpu.memory_space<vmem>>, vector<1x16x15xf32>
    tpu.vector_store %arg4[%c0_6, %c0_7, %c0_8], %12 {strides = array<i32>} : memref<1x16x15xf32, #tpu.memory_space<vmem>>, vector<1x16x15xf32>,
    return
  }
  func.func @transform_0(%arg0: i32) -> (i32, i32) {
    %c0_i32 = arith.constant 0 : i32
    %c0_i32_0 = arith.constant 0 : i32
    %c0_i32_1 = arith.constant 0 : i32
    return %c0_i32, %c0_i32_0 : i32, i32
  }
  func.func @transform_1(%arg0: i32) -> i32 {
    %c0_i32 = arith.constant 0 : i32
    %c0_i32_0 = arith.constant 0 : i32
    return %c0_i32 : i32
  }
  func.func @transform_2(%arg0: i32) -> (i32, i32, i32) {
    %c0_i32 = arith.constant 0 : i32
    %c0_i32_0 = arith.constant 0 : i32
    %c0_i32_1 = arith.constant 0 : i32
    return %arg0, %c0_i32, %c0_i32_0 : i32, i32, i32
  }
  func.func @transform_3(%arg0: i32) -> (i32, i32, i32) {
    %c0_i32 = arith.constant 0 : i32
    %c0_i32_0 = arith.constant 0 : i32
    %c0_i32_1 = arith.constant 0 : i32
    return %arg0, %c0_i32, %c0_i32_0 : i32, i32, i32
  }
}

</mosaic_0001>

<llo_original>
// kernel: tpu_custom_call.1
$region0: #{tpu_custom_call.1}
  #allocation0 [shape = 'u32[]', space=smem, size = 0x4, offset = 0x4, fixed_abs, tag = 'smem constant byte address 0x4 - core index']
  #allocation1 [shape = 'u32[144,128]{1,0:T(1,128)}', space=vmem, size = 0x12000, scoped, tag = 'internal scratch']
  #allocation2 [shape = 'f32[1]{0:T(128)S(6)}', space=smem, size = 0x200, scoped, tag = 'scoped memory for tpu_custom_call.1']
  %s0 = inlined_call_operand.vmem [shape: f32[1,2], index: 0, kind: input, shape index: {}]
  %s1 = inlined_call_operand.<no memory space> [shape: f32[1], index: 1, kind: input, shape index: {}]
  %s2 = inlined_call_operand.hbm [shape: f32[1,16,16], index: 2, kind: input, shape index: {}]
  %s3 = inlined_call_operand.vmem [shape: f32[1,16,15], index: 3, kind: output, shape index: {}]
  %s4 = sld [smem:[#allocation0]]
  $region30: #{tpu_custom_call.1} parent=0
    _
  %s6 = ssub.s32 1, %s4
  %s7 = scalar_select 0, %s6, %s4
  %8 = sst [smem:[#allocation2]] %s1
  $region1: #{tpu_custom_call.1} parent=0
    #allocation3 [shape = 'u8[512]{0}', space=smem, size = 0x200, scoped, tag = 'input window, operand 0, single buffered']
    #allocation4 [shape = 's32[1]{0}', space=sflag, size = 0x4, scoped, tag = 'scoped memory for tpu_custom_call.1']
    #allocation5 [shape = 's32[1]{0}', space=sflag, size = 0x4, scoped, tag = 'scoped memory for tpu_custom_call.1']
    #allocation6 [shape = 'u8[8192]{0}', space=vmem, size = 0x2000, scoped, tag = 'input window, operand 2, single buffered']
    %9 = vsyncpa [#allocation5], 0
    %10 = vsyncpa [#allocation4], 0
    // Predicated region
    $region2: #{tpu_custom_call.1} parent=1 // pred_check
      _
    $region3: #{tpu_custom_call.1} parent=1 // pred_check_branch
      %12 = sbr.rel (0) target = $region5
    $region4: #{tpu_custom_call.1} parent=1 // pred_region
      %s14 = ssub.s32 16, 16
      %15 = vsyncadd [#allocation5], %s14
      %s17 = sshll.u32 %s0, 4
      %s18 = int_to_ptr.vmem [resolvable:$true] %s17
      %20 = dma.vmem_to_smem %s18, 16, [#allocation3], [#allocation5]
    $region5: #{tpu_custom_call.1} parent=1 // pred_fallthru
      _
    // Predicated region
    $region6: #{tpu_custom_call.1} parent=1 // pred_check
      _
    $region7: #{tpu_custom_call.1} parent=1 // pred_check_branch
      %22 = sbr.rel (0) target = $region9
    $region8: #{tpu_custom_call.1} parent=1 // pred_region
      _
    $region9: #{tpu_custom_call.1} parent=1 // pred_fallthru
      _
    // Predicated region
    $region10: #{tpu_custom_call.1} parent=1 // pred_check
      _
    $region11: #{tpu_custom_call.1} parent=1 // pred_check_branch
      %24 = sbr.rel (0) target = $region13
    $region12: #{tpu_custom_call.1} parent=1 // pred_region
      %s26 = ssub.s32 256, 256
      %27 = vsyncadd [#allocation4], %s26
      %s28 = sshll.u32 [#allocation6], 4
      %s29 = int_to_ptr.vmem [resolvable:$true] %s28
      %34 = dma.hbm_to_vmem [thread:$0]  %s2, 256, %s29, [#allocation4], 128, 128, 8
    $region13: #{tpu_custom_call.1} parent=1 // pred_fallthru
      _
    // Predicated region
    $region14: #{tpu_custom_call.1} parent=1 // pred_check
      _
    $region15: #{tpu_custom_call.1} parent=1 // pred_check_branch
      %36 = sbr.rel (0) target = $region17
    $region16: #{tpu_custom_call.1} parent=1 // pred_region
      %37 = dma.done [#allocation5], 16
    $region17: #{tpu_custom_call.1} parent=1 // pred_fallthru
      _
    // Predicated region
    $region18: #{tpu_custom_call.1} parent=1 // pred_check
      _
    $region19: #{tpu_custom_call.1} parent=1 // pred_check_branch
      %39 = sbr.rel (0) target = $region21
    $region20: #{tpu_custom_call.1} parent=1 // pred_region
      %40 = dma.done [#allocation4], 256
    $region21: #{tpu_custom_call.1} parent=1 // pred_fallthru
      _
    %41 = sfence
    %v42 = vld [vmem:[#allocation6] sm:$0xff]
    %v43 = vld [vmem:[#allocation6 + $0x8] sm:$0xff]
    %s44 = sld [smem:[#allocation2]]
    %v45 = vstv %s44
    %s46 = sld [smem:[#allocation3]]
    %v47 = vstv %s46
    %v48 = vmul.f32 %v42, %v47
    %v49 = vmul.f32 %v43, %v47
    %v50 = vadd.f32 %v45, %v48
    %v51 = vadd.f32 %v45, %v49
    %s52 = sld [smem:[#allocation3 + $0x1]]
    %v53 = vstv %s52
    %v54 = vmul.f32 %v42, %v53
    %v55 = vmul.f32 %v43, %v53
    %58 = vrot.lane.b32.xlu0 %v54, 127
    %v59 = vpop.permute.xlu0 %58
    %60 = vrot.lane.b32.xlu0 %v55, 127
    %v61 = vpop.permute.xlu0 %60
    %v64 = vadd.f32 %v50, %v59
    %v65 = vadd.f32 %v51, %v61
    %vm66 = vcmask 121856
    %67 = vst.msk [vmem:[%s3] sm:$0xff] %vm66, %v64
    %68 = vst.msk [vmem:[%s3 + $0x8] sm:$0xff] %vm66, %v65
    // Predicated region
    $region22: #{tpu_custom_call.1} parent=1 // pred_check
      _
    $region23: #{tpu_custom_call.1} parent=1 // pred_check_branch
      %70 = sbr.rel (0) target = $region25
    $region24: #{tpu_custom_call.1} parent=1 // pred_region
      _
    $region25: #{tpu_custom_call.1} parent=1 // pred_fallthru
      _
    // Predicated region
    $region26: #{tpu_custom_call.1} parent=1 // pred_check
      _
    $region27: #{tpu_custom_call.1} parent=1 // pred_check_branch
      %72 = sbr.rel (0) target = $region29
    $region28: #{tpu_custom_call.1} parent=1 // pred_region
      _
    $region29: #{tpu_custom_call.1} parent=1 // pred_fallthru
      _
    %73 = vsyncpa [#allocation4], 1
    %74 = vsyncpa [#allocation5], 1

</llo_original>
